<compile_context>
chip_gen: v7x
topology: tpu7x:2x2x1
jax: 0.10.0
libtpu: 0.0.40
codegen_flags: <defaults>
</compile_context>

<pallas_src>
import functools
import math

import jax
import jax.numpy as jnp
from jax.experimental import pallas as pl
from jax.experimental.pallas import tpu as pltpu

LANE = 128      # last-dim alignment for dense vector stores / MXU feeds
SUBLANE = 8     # second-to-last-dim alignment


def _round_up(x, m):
    return (x + m - 1) // m * m


def _chip_info():
    """Generation-aware budgets (pure-Python, trace-time safe)."""
    kind = ""
    try:
        kind = jax.devices()[0].device_kind.lower()
    except Exception:
        pass
    if "v7" in kind or "7x" in kind:
        # 64 MiB physical VMEM per TensorCore -> ~48 MiB usable scoped budget.
        return {"name": "v7x", "vmem_cap": 48 << 20, "bf16_vpu": True}
    if "v6" in kind:
        return {"name": "v6e", "vmem_cap": 100 << 20, "bf16_vpu": True}
    if "v5" in kind:
        # v5e: 128 MiB VMEM but no bf16 VPU -> keep f32 epilogue.
        return {"name": "v5e", "vmem_cap": 100 << 20, "bf16_vpu": False}
    # Unknown chip: assume the most restrictive (v7x-like) VMEM budget.
    return {"name": "unknown", "vmem_cap": 48 << 20, "bf16_vpu": True}


# ---------------------------------------------------------------------------
# One-time parameter preparation (hoisted out of the per-call forward path).
# ---------------------------------------------------------------------------
def prepare_mlp_params(params):
    """Pad every feature dim to a multiple of 128 and cast weights to bf16.

    Call ONCE at init; reuse the returned (weights, biases) tuples for every
    forward call so no per-call HBM re-read/cast/pad of the weights happens.
    Zero-padded rows/cols and zero bias lanes keep the padded math exact.
    """
    dims = [params[0][0].shape[0]] + [w.shape[1] for (w, _) in params]
    dims_p = [_round_up(d, LANE) for d in dims]
    ws, bs = [], []
    for i, (w, b) in enumerate(params):
        kin, nout = dims[i], dims[i + 1]
        wp = jnp.zeros((dims_p[i], dims_p[i + 1]), jnp.bfloat16)
        wp = wp.at[:kin, :nout].set(jnp.asarray(w, jnp.bfloat16))
        bp = jnp.zeros((1, dims_p[i + 1]), jnp.float32)
        bp = bp.at[:, :nout].set(jnp.asarray(b, jnp.float32).reshape(1, nout))
        ws.append(wp)
        bs.append(bp)
    return tuple(ws), tuple(bs)


def _pad_input(x, k0p, bp):
    B, K0 = x.shape
    xs = jnp.zeros((bp, k0p), jnp.bfloat16)
    return xs.at[:B, :K0].set(x.astype(jnp.bfloat16))


# ---------------------------------------------------------------------------
# Path A: fully fused MLP (weights resident in VMEM, batch-only grid).
# ---------------------------------------------------------------------------
def _fused_mlp_kernel(*refs, num_layers, bf16_epilogue):
    """refs = (x_ref, w0, b0, ..., w_{L-1}, b_{L-1}, out_ref).

    Activations stay on-chip between layers; matmuls run on the MXU in bf16
    with f32 accumulation.  Hidden-layer epilogue (bias+ReLU) is bf16 on
    bf16-VPU chips, f32 otherwise; the final bias add is always f32.
    """
    x_ref = refs[0]
    o_ref = refs[-1]
    h = x_ref[...]                                            # bf16 [TM, K0p]
    for i in range(num_layers):
        w_ref = refs[1 + 2 * i]                               # bf16 [Kp, Np]
        b_ref = refs[2 + 2 * i]                               # f32  [1,  Np]
        acc = jnp.dot(h, w_ref[...], preferred_element_type=jnp.float32)
        if i < num_layers - 1:
            if bf16_epilogue:
                h = jnp.maximum(
                    acc.astype(jnp.bfloat16) + b_ref[...].astype(jnp.bfloat16), 0)
            else:
                h = jnp.maximum(acc + b_ref[...], 0.0).astype(jnp.bfloat16)
        else:
            h = acc + b_ref[...]                              # final layer, f32
    o_ref[...] = h.astype(o_ref.dtype)


def _mlp_fused(ws, bs, x, out_dim, out_dtype, bf16_epilogue, chip):
    B, _ = x.shape
    L = len(ws)
    dims_p = [ws[0].shape[0]] + [w.shape[1] for w in ws]
    out_itemsize = jnp.dtype(out_dtype).itemsize
    w_bytes = sum(w.size * 2 for w in ws) + sum(b.size * 4 for b in bs)
    headroom = 4 << 20
    cap = chip["vmem_cap"]

    # Largest batch tile (<= 512) whose double-buffered x/out tiles still fit
    # next to the (double-buffered) resident weights.
    TM = SUBLANE
    for cand in (512, 256, 128, 64, 32, 16, 8):
        tm = min(cand, _round_up(B, SUBLANE))
        tile_bytes = 2 * (tm * dims_p[0] * 2 + tm * dims_p[-1] * out_itemsize)
        if 2 * w_bytes + tile_bytes + headroom <= cap:
            TM = tm
            break
    Bp = _round_up(B, TM)

    xs = _pad_input(x, dims_p[0], Bp)
    flat_inputs = [xs]
    for w, b in zip(ws, bs):
        flat_inputs += [w, b]

    vmem = pltpu.MemorySpace.VMEM
    in_specs = [pl.BlockSpec((TM, dims_p[0]), lambda i: (i, 0),
                             memory_space=vmem)]
    for li in range(L):
        in_specs.append(pl.BlockSpec((dims_p[li], dims_p[li + 1]),
                                     lambda i: (0, 0), memory_space=vmem))
        in_specs.append(pl.BlockSpec((1, dims_p[li + 1]),
                                     lambda i: (0, 0), memory_space=vmem))
    out_specs = pl.BlockSpec((TM, dims_p[-1]), lambda i: (i, 0),
                             memory_space=vmem)

    flops = 2 * Bp * sum(dims_p[i] * dims_p[i + 1] for i in range(L))
    bytes_accessed = xs.size * 2 + w_bytes + Bp * dims_p[-1] * out_itemsize
    tile_bytes = 2 * (TM * dims_p[0] * 2 + TM * dims_p[-1] * out_itemsize)
    vmem_limit = int(min(cap, max(2 * w_bytes + tile_bytes + headroom, 16 << 20)))

    kernel = functools.partial(_fused_mlp_kernel, num_layers=L,
                               bf16_epilogue=bf16_epilogue)
    out_p = pl.pallas_call(
        kernel,
        out_shape=jax.ShapeDtypeStruct((Bp, dims_p[-1]), out_dtype),
        grid=(Bp // TM,),
        in_specs=in_specs,
        out_specs=out_specs,
        compiler_params=pltpu.CompilerParams(
            dimension_semantics=("parallel",),
            vmem_limit_bytes=vmem_limit),
        cost_estimate=pl.CostEstimate(flops=int(flops), transcendentals=0,
                                      bytes_accessed=int(bytes_accessed)),
    )(*flat_inputs)
    return out_p[:B, :out_dim]


# ---------------------------------------------------------------------------
# Path B: K/N-tiled per-layer fallback (weights streamed, f32 accumulator).
# ---------------------------------------------------------------------------
def _linear_kernel(x_ref, w_ref, b_ref, o_ref, acc_ref, *, relu, bf16_epilogue):
    k = pl.program_id(2)

    @pl.when(k == 0)
    def _():
        acc_ref[...] = jnp.zeros_like(acc_ref)

    acc_ref[...] += jnp.dot(x_ref[...], w_ref[...],
                            preferred_element_type=jnp.float32)

    @pl.when(k == pl.num_programs(2) - 1)
    def _():
        y = acc_ref[...]
        if relu:
            if bf16_epilogue:
                y = jnp.maximum(
                    y.astype(jnp.bfloat16) + b_ref[...].astype(jnp.bfloat16), 0)
            else:
                y = jnp.maximum(y + b_ref[...], 0.0)
        else:
            y = y + b_ref[...]                      # final layer: f32 bias add
        o_ref[...] = y.astype(o_ref.dtype)


def _pick_tile(dim_p):
    for t in (512, 256, 128):
        if dim_p % t == 0:
            return t
    return dim_p


def _linear_tiled(h, w, b, *, tm, relu, out_dtype, bf16_epilogue, chip):
    Bp, Kp = h.shape
    _, Np = w.shape
    tk = _pick_tile(Kp)
    tn = _pick_tile(Np)
    out_itemsize = jnp.dtype(out_dtype).itemsize
    need = (2 * (tm * tk * 2 + tk * tn * 2 + tn * 4 + tm * tn * out_itemsize)
            + tm * tn * 4 + (4 << 20))
    vmem_limit = int(min(chip["vmem_cap"], max(need, 16 << 20)))
    flops = 2 * Bp * Kp * Np
    bytes_accessed = Bp * Kp * 2 + Kp * Np * 2 + Np * 4 + Bp * Np * out_itemsize

    kernel = functools.partial(_linear_kernel, relu=relu,
                               bf16_epilogue=bf16_epilogue)
    return pl.pallas_call(
        kernel,
        out_shape=jax.ShapeDtypeStruct((Bp, Np), out_dtype),
        grid=(Bp // tm, Np // tn, Kp // tk),
        in_specs=[pl.BlockSpec((tm, tk), lambda i, j, k: (i, k)),
                  pl.BlockSpec((tk, tn), lambda i, j, k: (k, j)),
                  pl.BlockSpec((1, tn), lambda i, j, k: (0, j))],
        out_specs=pl.BlockSpec((tm, tn), lambda i, j, k: (i, j)),
        scratch_shapes=[pltpu.VMEM((tm, tn), jnp.float32)],
        compiler_params=pltpu.CompilerParams(
            dimension_semantics=("parallel", "parallel", "arbitrary"),
            vmem_limit_bytes=vmem_limit),
        cost_estimate=pl.CostEstimate(flops=int(flops), transcendentals=0,
                                      bytes_accessed=int(bytes_accessed)),
    )(h, w, b)


def _mlp_tiled(ws, bs, x, out_dim, out_dtype, bf16_epilogue, chip):
    B, _ = x.shape
    L = len(ws)
    tm = min(256, _round_up(B, SUBLANE))
    Bp = _round_up(B, tm)
    h = _pad_input(x, ws[0].shape[0], Bp)
    for i in range(L):
        last = (i == L - 1)
        h = _linear_tiled(h, ws[i], bs[i], tm=tm, relu=not last,
                          out_dtype=(out_dtype if last else jnp.bfloat16),
                          bf16_epilogue=bf16_epilogue, chip=chip)
    return h[:B, :out_dim]


# ---------------------------------------------------------------------------
# Public forward: dispatch between full-fusion and tiled fallback.
# ---------------------------------------------------------------------------
def mlp_forward(ws, bs, x, *, out_dim, out_dtype=jnp.float32, force_tiled=False):
    """MLPLayer.forward (is_top=True): (Linear+ReLU) x (L-1) -> Linear."""
    chip = _chip_info()
    bf16_epilogue = chip["bf16_vpu"]
    out_itemsize = jnp.dtype(out_dtype).itemsize
    w_bytes = sum(w.size * 2 for w in ws) + sum(b.size * 4 for b in bs)
    min_tile_bytes = 2 * (SUBLANE * ws[0].shape[0] * 2
                          + SUBLANE * ws[-1].shape[1] * out_itemsize)
    fused_fits = 2 * w_bytes + min_tile_bytes + (4 << 20) <= chip["vmem_cap"]
    if fused_fits and not force_tiled:
        return _mlp_fused(ws, bs, x, out_dim, out_dtype, bf16_epilogue, chip)
    return _mlp_tiled(ws, bs, x, out_dim, out_dtype, bf16_epilogue, chip)


# ---------------------------------------------------------------------------
# Init + references.
# ---------------------------------------------------------------------------
def init_mlp_params(key, input_dim, output_dim, hidden_dims):
    """PyTorch nn.Linear-style init: U(-1/sqrt(fan_in), 1/sqrt(fan_in))."""
    if hidden_dims is None:
        hidden_dims = []
    elif isinstance(hidden_dims, int):
        hidden_dims = [hidden_dims]
    dims = [input_dim] + list(hidden_dims) + [output_dim]
    params = []
    for i in range(len(dims) - 1):
        fan_in, fan_out = dims[i], dims[i + 1]
        key, kw, kb = jax.random.split(key, 3)
        bound = 1.0 / math.sqrt(fan_in)
        w = jax.random.uniform(kw, (fan_in, fan_out), jnp.float32, -bound, bound)
        b = jax.random.uniform(kb, (1, fan_out), jnp.float32, -bound, bound)
        params.append((w, b))
    return params


def mlp_forward_ref(params, x, *, bf16_epilogue):
    """Pure-JAX reference mirroring the kernel's exact numeric path."""
    n = len(params)
    h = x.astype(jnp.bfloat16)
    for i, (w, b) in enumerate(params):
        acc = jnp.dot(h, w.astype(jnp.bfloat16),
                      preferred_element_type=jnp.float32)
        bf = b.reshape(1, -1).astype(jnp.float32)
        if i < n - 1:
            if bf16_epilogue:
                h = jnp.maximum(
                    acc.astype(jnp.bfloat16) + bf.astype(jnp.bfloat16), 0)
            else:
                h = jnp.maximum(acc + bf, 0.0).astype(jnp.bfloat16)
        else:
            h = acc + bf
    return h


def mlp_forward_ref_f32(params, x):
    """Full-precision reference (loose tolerance vs. the bf16 kernel)."""
    n = len(params)
    for i, (w, b) in enumerate(params):
        x = x @ w + b
        if i < n - 1:
            x = jnp.maximum(x, 0.0)
    return x


if __name__ == "__main__":
    key = jax.random.PRNGKey(0)
    chip = _chip_info()

    # MLP(input_dim=16 -> hidden [32, 32] -> 8), batch 8  (fused path).
    batch, input_dim, output_dim = 8, 16, 8
    hidden_dims = [32, 32]
    kx, kp = jax.random.split(key)
    x = jax.random.normal(kx, (batch, input_dim), jnp.float32)
    params = init_mlp_params(kp, input_dim, output_dim, hidden_dims)
    ws, bs = prepare_mlp_params(params)       # one-time pad/cast, NOT per call

    fwd = jax.jit(mlp_forward,
                  static_argnames=("out_dim", "out_dtype", "force_tiled"))
    out = jax.block_until_ready(fwd(ws, bs, x, out_dim=output_dim))
    assert out.shape == (batch, output_dim)

    ref_exact = mlp_forward_ref(params, x, bf16_epilogue=chip["bf16_vpu"])
    ref_f32 = mlp_forward_ref_f32(params, x)
    assert jnp.allclose(out, ref_exact, atol=2e-3, rtol=2e-3), "bf16-path mismatch"
    assert jnp.allclose(out, ref_f32, atol=5e-2, rtol=5e-2), "f32-ref mismatch"

    # Exercise the K/N-tiled fallback path (large-hidden-dim regime) too.
    batch2, in2, out2 = 16, 64, 48
    hidden2 = [256, 128]
    kx2, kp2 = jax.random.split(jax.random.PRNGKey(1))
    x2 = jax.random.normal(kx2, (batch2, in2), jnp.float32)
    params2 = init_mlp_params(kp2, in2, out2, hidden2)
    ws2, bs2 = prepare_mlp_params(params2)
    out_t = jax.block_until_ready(
        fwd(ws2, bs2, x2, out_dim=out2, force_tiled=True))
    assert out_t.shape == (batch2, out2)
    ref2 = mlp_forward_ref(params2, x2, bf16_epilogue=chip["bf16_vpu"])
    assert jnp.allclose(out_t, ref2, atol=3e-3, rtol=3e-3), "tiled-path mismatch"

    print("KERNEL_OK")
</pallas_src>

<mosaic_0001>
module attributes {stable_mosaic.version = 11 : i64} {
  func.func @_fused_mlp_kernel(%arg0: i32, %arg1: memref<8x128xbf16, #tpu.memory_space<vmem>>, %arg2: memref<128x128xbf16, #tpu.memory_space<vmem>>, %arg3: memref<1x128xf32, #tpu.memory_space<vmem>>, %arg4: memref<128x128xbf16, #tpu.memory_space<vmem>>, %arg5: memref<1x128xf32, #tpu.memory_space<vmem>>, %arg6: memref<128x128xbf16, #tpu.memory_space<vmem>>, %arg7: memref<1x128xf32, #tpu.memory_space<vmem>>, %arg8: memref<8x128xf32, #tpu.memory_space<vmem>>) attributes {dimension_semantics = [#tpu.dimension_semantics<parallel>], iteration_bounds = array<i64: 1>, scalar_prefetch = 0 : i64, scratch_operands = 0 : i64, tpu.core_type = #tpu.core_type<tc>, window_params = [{transform_indices = @transform_0, window_bounds = array<i64: 8, 128>}, {pipeline_mode = #tpu.pipeline_mode<synchronous>, transform_indices = @transform_1, window_bounds = array<i64: 128, 128>}, {pipeline_mode = #tpu.pipeline_mode<synchronous>, transform_indices = @transform_2, window_bounds = array<i64: 1, 128>}, {pipeline_mode = #tpu.pipeline_mode<synchronous>, transform_indices = @transform_3, window_bounds = array<i64: 128, 128>}, {pipeline_mode = #tpu.pipeline_mode<synchronous>, transform_indices = @transform_4, window_bounds = array<i64: 1, 128>}, {pipeline_mode = #tpu.pipeline_mode<synchronous>, transform_indices = @transform_5, window_bounds = array<i64: 128, 128>}, {pipeline_mode = #tpu.pipeline_mode<synchronous>, transform_indices = @transform_6, window_bounds = array<i64: 1, 128>}, {transform_indices = @transform_7, window_bounds = array<i64: 8, 128>}]} {
    %c0 = arith.constant 0 : index
    %c0_0 = arith.constant 0 : index
    %0 = vector.load %arg1[%c0, %c0_0] : memref<8x128xbf16, #tpu.memory_space<vmem>>, vector<8x128xbf16>
    %c0_1 = arith.constant 0 : index
    %c0_2 = arith.constant 0 : index
    %1 = vector.load %arg2[%c0_1, %c0_2] : memref<128x128xbf16, #tpu.memory_space<vmem>>, vector<128x128xbf16>
    %cst = arith.constant dense<0.000000e+00> : vector<8x128xf32>
    %2 = tpu.matmul %0, %1, %cst {dimension_numbers = #tpu.dot_dimension_numbers<[1], [0], [0], [1], [0, 0, 1, 1], [], []>} : vector<8x128xbf16>, vector<128x128xbf16>, vector<8x128xf32> -> vector<8x128xf32>
    %3 = arith.truncf %2 : vector<8x128xf32> to vector<8x128xbf16>
    %c0_3 = arith.constant 0 : index
    %c0_4 = arith.constant 0 : index
    %4 = vector.load %arg3[%c0_3, %c0_4] : memref<1x128xf32, #tpu.memory_space<vmem>>, vector<1x128xf32>
    %5 = arith.truncf %4 : vector<1x128xf32> to vector<1x128xbf16>
    %6 = vector.broadcast %5 : vector<1x128xbf16> to vector<8x128xbf16>
    %7 = arith.addf %3, %6 : vector<8x128xbf16>
    %cst_5 = arith.constant 0.000000e+00 : bf16
    %8 = vector.broadcast %cst_5 : bf16 to vector<8x128xbf16>
    %9 = arith.maximumf %7, %8 : vector<8x128xbf16>
    %c0_6 = arith.constant 0 : index
    %c0_7 = arith.constant 0 : index
    %10 = vector.load %arg4[%c0_6, %c0_7] : memref<128x128xbf16, #tpu.memory_space<vmem>>, vector<128x128xbf16>
    %cst_8 = arith.constant dense<0.000000e+00> : vector<8x128xf32>
    %11 = tpu.matmul %9, %10, %cst_8 {dimension_numbers = #tpu.dot_dimension_numbers<[1], [0], [0], [1], [0, 0, 1, 1], [], []>} : vector<8x128xbf16>, vector<128x128xbf16>, vector<8x128xf32> -> vector<8x128xf32>
    %12 = arith.truncf %11 : vector<8x128xf32> to vector<8x128xbf16>
    %c0_9 = arith.constant 0 : index
    %c0_10 = arith.constant 0 : index
    %13 = vector.load %arg5[%c0_9, %c0_10] : memref<1x128xf32, #tpu.memory_space<vmem>>, vector<1x128xf32>
    %14 = arith.truncf %13 : vector<1x128xf32> to vector<1x128xbf16>
    %15 = vector.broadcast %14 : vector<1x128xbf16> to vector<8x128xbf16>
    %16 = arith.addf %12, %15 : vector<8x128xbf16>
    %cst_11 = arith.constant 0.000000e+00 : bf16
    %17 = vector.broadcast %cst_11 : bf16 to vector<8x128xbf16>
    %18 = arith.maximumf %16, %17 : vector<8x128xbf16>
    %c0_12 = arith.constant 0 : index
    %c0_13 = arith.constant 0 : index
    %19 = vector.load %arg6[%c0_12, %c0_13] : memref<128x128xbf16, #tpu.memory_space<vmem>>, vector<128x128xbf16>
    %cst_14 = arith.constant dense<0.000000e+00> : vector<8x128xf32>
    %20 = tpu.matmul %18, %19, %cst_14 {dimension_numbers = #tpu.dot_dimension_numbers<[1], [0], [0], [1], [0, 0, 1, 1], [], []>} : vector<8x128xbf16>, vector<128x128xbf16>, vector<8x128xf32> -> vector<8x128xf32>
    %c0_15 = arith.constant 0 : index
    %c0_16 = arith.constant 0 : index
    %21 = vector.load %arg7[%c0_15, %c0_16] : memref<1x128xf32, #tpu.memory_space<vmem>>, vector<1x128xf32>
    %22 = vector.broadcast %21 : vector<1x128xf32> to vector<8x128xf32>
    %23 = arith.addf %20, %22 : vector<8x128xf32>
    %c0_17 = arith.constant 0 : index
    %c0_18 = arith.constant 0 : index
    %24 = vector.load %arg8[%c0_17, %c0_18] : memref<8x128xf32, #tpu.memory_space<vmem>>, vector<8x128xf32>
    tpu.vector_store %arg8[%c0_17, %c0_18], %23 {strides = array<i32>} : memref<8x128xf32, #tpu.memory_space<vmem>>, vector<8x128xf32>,
    return
  }
  func.func @transform_0(%arg0: i32) -> (i32, i32) {
    %c0_i32 = arith.constant 0 : i32
    %c0_i32_0 = arith.constant 0 : i32
    return %arg0, %c0_i32 : i32, i32
  }
  func.func @transform_1(%arg0: i32) -> (i32, i32) {
    %c0_i32 = arith.constant 0 : i32
    %c0_i32_0 = arith.constant 0 : i32
    %c0_i32_1 = arith.constant 0 : i32
    return %c0_i32, %c0_i32_0 : i32, i32
  }
  func.func @transform_2(%arg0: i32) -> (i32, i32) {
    %c0_i32 = arith.constant 0 : i32
    %c0_i32_0 = arith.constant 0 : i32
    %c0_i32_1 = arith.constant 0 : i32
    return %c0_i32, %c0_i32_0 : i32, i32
  }
  func.func @transform_3(%arg0: i32) -> (i32, i32) {
    %c0_i32 = arith.constant 0 : i32
    %c0_i32_0 = arith.constant 0 : i32
    %c0_i32_1 = arith.constant 0 : i32
    return %c0_i32, %c0_i32_0 : i32, i32
  }
  func.func @transform_4(%arg0: i32) -> (i32, i32) {
    %c0_i32 = arith.constant 0 : i32
    %c0_i32_0 = arith.constant 0 : i32
    %c0_i32_1 = arith.constant 0 : i32
    return %c0_i32, %c0_i32_0 : i32, i32
  }
  func.func @transform_5(%arg0: i32) -> (i32, i32) {
    %c0_i32 = arith.constant 0 : i32
    %c0_i32_0 = arith.constant 0 : i32
    %c0_i32_1 = arith.constant 0 : i32
    return %c0_i32, %c0_i32_0 : i32, i32
  }
  func.func @transform_6(%arg0: i32) -> (i32, i32) {
    %c0_i32 = arith.constant 0 : i32
    %c0_i32_0 = arith.constant 0 : i32
    %c0_i32_1 = arith.constant 0 : i32
    return %c0_i32, %c0_i32_0 : i32, i32
  }
  func.func @transform_7(%arg0: i32) -> (i32, i32) {
    %c0_i32 = arith.constant 0 : i32
    %c0_i32_0 = arith.constant 0 : i32
    return %arg0, %c0_i32 : i32, i32
  }
}

</mosaic_0001>

<llo_original>
// kernel: mlp_forward.1
$region0: #{mlp_forward.1}
  #allocation0 [shape = 'u32[]', space=smem, size = 0x4, offset = 0x4, fixed_abs, tag = 'smem constant byte address 0x4 - core index']
  #allocation1 [shape = 'u32[144,128]{1,0:T(1,128)}', space=vmem, size = 0x12000, scoped, tag = 'internal scratch']
  %s0 = inlined_call_operand.vmem [shape: bf16[8,128], index: 0, kind: input, shape index: {}]
  %s1 = inlined_call_operand.hbm [shape: bf16[128,128], index: 1, kind: input, shape index: {}]
  %s2 = inlined_call_operand.vmem [shape: f32[1,128], index: 2, kind: input, shape index: {}]
  %s3 = inlined_call_operand.hbm [shape: bf16[128,128], index: 3, kind: input, shape index: {}]
  %s4 = inlined_call_operand.vmem [shape: f32[1,128], index: 4, kind: input, shape index: {}]
  %s5 = inlined_call_operand.hbm [shape: bf16[128,128], index: 5, kind: input, shape index: {}]
  %s6 = inlined_call_operand.vmem [shape: f32[1,128], index: 6, kind: input, shape index: {}]
  %s7 = inlined_call_operand.hbm [shape: f32[8,128], index: 7, kind: output, shape index: {}]
  %s8 = sld [smem:[#allocation0]]
  $region50: #{mlp_forward.1} parent=0
    _
  %s10 = ssub.s32 1, %s8
  %s11 = scalar_select 0, %s10, %s8
  $region1: #{mlp_forward.1} parent=0
    #allocation2 [shape = 'u8[32768]{0}', space=vmem, size = 0x8000, scoped, tag = 'input window, operand 1, single buffered']
    #allocation3 [shape = 's32[1]{0}', space=sflag, size = 0x4, scoped, tag = 'scoped memory for mlp_forward.1']
    #allocation4 [shape = 's32[1]{0}', space=sflag, size = 0x4, scoped, tag = 'scoped memory for mlp_forward.1']
    #allocation5 [shape = 'u8[32768]{0}', space=vmem, size = 0x8000, scoped, tag = 'input window, operand 3, single buffered']
    #allocation6 [shape = 's32[1]{0}', space=sflag, size = 0x4, scoped, tag = 'scoped memory for mlp_forward.1']
    #allocation7 [shape = 'u8[32768]{0}', space=vmem, size = 0x8000, scoped, tag = 'input window, operand 5, single buffered']
    #allocation8 [shape = 'u8[4096]{0}', space=vmem, size = 0x1000, scoped, tag = 'output window, operand 0, single buffered']
    %12 = vsyncpa [#allocation3], 0
    %13 = vsyncpa [#allocation6], 0
    %14 = vsyncpa [#allocation4], 0
    // Predicated region
    $region2: #{mlp_forward.1} parent=1 // pred_check
      _
    $region3: #{mlp_forward.1} parent=1 // pred_check_branch
      %16 = sbr.rel (0) target = $region5
    $region4: #{mlp_forward.1} parent=1 // pred_region
      _
    $region5: #{mlp_forward.1} parent=1 // pred_fallthru
      _
    // Predicated region
    $region6: #{mlp_forward.1} parent=1 // pred_check
      _
    $region7: #{mlp_forward.1} parent=1 // pred_check_branch
      %18 = sbr.rel (0) target = $region9
    $region8: #{mlp_forward.1} parent=1 // pred_region
      %s20 = ssub.s32 1024, 1024
      %21 = vsyncadd [#allocation3], %s20
      %s22 = sshll.u32 [#allocation2], 4
      %s23 = int_to_ptr.vmem [resolvable:$true] %s22
      %28 = dma.hbm_to_vmem [thread:$0]  %s1, 1024, %s23, [#allocation3], 64, 64, 4
    $region9: #{mlp_forward.1} parent=1 // pred_fallthru
      _
    // Predicated region
    $region10: #{mlp_forward.1} parent=1 // pred_check
      _
    $region11: #{mlp_forward.1} parent=1 // pred_check_branch
      %30 = sbr.rel (0) target = $region13
    $region12: #{mlp_forward.1} parent=1 // pred_region
      _
    $region13: #{mlp_forward.1} parent=1 // pred_fallthru
      _
    // Predicated region
    $region14: #{mlp_forward.1} parent=1 // pred_check
      _
    $region15: #{mlp_forward.1} parent=1 // pred_check_branch
      %32 = sbr.rel (0) target = $region17
    $region16: #{mlp_forward.1} parent=1 // pred_region
      %s34 = ssub.s32 1024, 1024
      %35 = vsyncadd [#allocation6], %s34
      %s36 = sshll.u32 [#allocation5], 4
      %s37 = int_to_ptr.vmem [resolvable:$true] %s36
      %42 = dma.hbm_to_vmem [thread:$0]  %s3, 1024, %s37, [#allocation6], 64, 64, 4
    $region17: #{mlp_forward.1} parent=1 // pred_fallthru
      _
    // Predicated region
    $region18: #{mlp_forward.1} parent=1 // pred_check
      _
    $region19: #{mlp_forward.1} parent=1 // pred_check_branch
      %44 = sbr.rel (0) target = $region21
    $region20: #{mlp_forward.1} parent=1 // pred_region
      _
    $region21: #{mlp_forward.1} parent=1 // pred_fallthru
      _
    // Predicated region
    $region22: #{mlp_forward.1} parent=1 // pred_check
      _
    $region23: #{mlp_forward.1} parent=1 // pred_check_branch
      %46 = sbr.rel (0) target = $region25
    $region24: #{mlp_forward.1} parent=1 // pred_region
      %s48 = ssub.s32 1024, 1024
      %49 = vsyncadd [#allocation6], %s48
      %s50 = sshll.u32 [#allocation7], 4
      %s51 = int_to_ptr.vmem [resolvable:$true] %s50
      %56 = dma.hbm_to_vmem [thread:$0]  %s5, 1024, %s51, [#allocation6], 64, 64, 4
    $region25: #{mlp_forward.1} parent=1 // pred_fallthru
      _
    // Predicated region
    $region26: #{mlp_forward.1} parent=1 // pred_check
      _
    $region27: #{mlp_forward.1} parent=1 // pred_check_branch
      %58 = sbr.rel (0) target = $region29
    $region28: #{mlp_forward.1} parent=1 // pred_region
      _
    $region29: #{mlp_forward.1} parent=1 // pred_fallthru
      _
    // Predicated region
    $region30: #{mlp_forward.1} parent=1 // pred_check
      _
    $region31: #{mlp_forward.1} parent=1 // pred_check_branch
      %60 = sbr.rel (0) target = $region33
    $region32: #{mlp_forward.1} parent=1 // pred_region
      %61 = dma.done [#allocation3], 1024
    $region33: #{mlp_forward.1} parent=1 // pred_fallthru
      _
    // Predicated region
    $region34: #{mlp_forward.1} parent=1 // pred_check
      _
    $region35: #{mlp_forward.1} parent=1 // pred_check_branch
      %63 = sbr.rel (0) target = $region37
    $region36: #{mlp_forward.1} parent=1 // pred_region
      %64 = dma.done [#allocation6], 1024
    $region37: #{mlp_forward.1} parent=1 // pred_fallthru
      _
    // Predicated region
    $region38: #{mlp_forward.1} parent=1 // pred_check
      _
    $region39: #{mlp_forward.1} parent=1 // pred_check_branch
      %66 = sbr.rel (0) target = $region41
    $region40: #{mlp_forward.1} parent=1 // pred_region
      %67 = dma.done [#allocation6], 1024
    $region41: #{mlp_forward.1} parent=1 // pred_fallthru
      _
    %v69 = vld [vmem:[%s0] sm:$0xf]
    %v70 = vld [vmem:[#allocation2] sm:$0xf]
    %v71 = vld [vmem:[#allocation2 + $0x4] sm:$0xf]
    %v72 = vld [vmem:[#allocation2 + $0x8] sm:$0xf]
    %v73 = vld [vmem:[#allocation2 + $0xc] sm:$0xf]
    %v74 = vld [vmem:[#allocation2 + $0x10] sm:$0xf]
    %v75 = vld [vmem:[#allocation2 + $0x14] sm:$0xf]
    %v76 = vld [vmem:[#allocation2 + $0x18] sm:$0xf]
    %v77 = vld [vmem:[#allocation2 + $0x1c] sm:$0xf]
    %v78 = vld [vmem:[#allocation2 + $0x20] sm:$0xf]
    %v79 = vld [vmem:[#allocation2 + $0x24] sm:$0xf]
    %v80 = vld [vmem:[#allocation2 + $0x28] sm:$0xf]
    %v81 = vld [vmem:[#allocation2 + $0x2c] sm:$0xf]
    %v82 = vld [vmem:[#allocation2 + $0x30] sm:$0xf]
    %v83 = vld [vmem:[#allocation2 + $0x34] sm:$0xf]
    %v84 = vld [vmem:[#allocation2 + $0x38] sm:$0xf]
    %v85 = vld [vmem:[#allocation2 + $0x3c] sm:$0xf]
    %v102 = vunpack.c.l.b16 %v70
    %v103 = vunpack.c.l.b16 %v71
    %v104 = vunpack.c.l.b16 %v72
    %v105 = vunpack.c.l.b16 %v73
    %v106 = vunpack.c.l.b16 %v74
    %v107 = vunpack.c.l.b16 %v75
    %v108 = vunpack.c.l.b16 %v76
    %v109 = vunpack.c.l.b16 %v77
    %v110 = vunpack.c.l.b16 %v78
    %v111 = vunpack.c.l.b16 %v79
    %v112 = vunpack.c.l.b16 %v80
    %v113 = vunpack.c.l.b16 %v81
    %v114 = vunpack.c.l.b16 %v82
    %v115 = vunpack.c.l.b16 %v83
    %v116 = vunpack.c.l.b16 %v84
    %v117 = vunpack.c.l.b16 %v85
    %v118 = vpack.c.b16 %v103, %v102
    %v119 = vpack.c.b16 %v105, %v104
    %v120 = vpack.c.b16 %v107, %v106
    %v121 = vpack.c.b16 %v109, %v108
    %v122 = vpack.c.b16 %v111, %v110
    %v123 = vpack.c.b16 %v113, %v112
    %v124 = vpack.c.b16 %v115, %v114
    %v125 = vpack.c.b16 %v117, %v116
    %134 = vmatprep.subr.bf16.mxu0 0
    %135 = vmatpush1.bf16.msra.mxu0 %v118
    %136 = vmatprep.subr.bf16.mxu0 0
    %137 = vmatpush1.bf16.msra.mxu0 %v119
    %138 = vmatprep.subr.bf16.mxu0 0
    %139 = vmatpush1.bf16.msra.mxu0 %v120
    %140 = vmatprep.subr.bf16.mxu0 0
    %141 = vmatpush1.bf16.msra.mxu0 %v121
    %142 = vmatprep.subr.bf16.mxu0 0
    %143 = vmatpush1.bf16.msra.mxu0 %v122
    %144 = vmatprep.subr.bf16.mxu0 0
    %145 = vmatpush1.bf16.msra.mxu0 %v123
    %146 = vmatprep.subr.bf16.mxu0 0
    %147 = vmatpush1.bf16.msra.mxu0 %v124
    %148 = vmatprep.subr.bf16.mxu0 0
    %149 = vmatpush1.bf16.msra.mxu0 %v125
    %150 = vmatprep.subr.bf16.mxu0 0
    %151 = vmatpush1.bf16.msra.mxu0 0
    %152 = vmatprep.subr.bf16.mxu0 0
    %153 = vmatpush1.bf16.msra.mxu0 0
    %154 = vmatprep.subr.bf16.mxu0 0
    %155 = vmatpush1.bf16.msra.mxu0 0
    %156 = vmatprep.subr.bf16.mxu0 0
    %157 = vmatpush1.bf16.msra.mxu0 0
    %158 = vmatprep.subr.bf16.mxu0 0
    %159 = vmatpush1.bf16.msra.mxu0 0
    %160 = vmatprep.subr.bf16.mxu0 0
    %161 = vmatpush1.bf16.msra.mxu0 0
    %162 = vmatprep.subr.bf16.mxu0 0
    %163 = vmatpush1.bf16.msra.mxu0 0
    %164 = vmatprep.subr.bf16.mxu0 0
    %165 = vmatpush1.bf16.msra.mxu0 0
    %166 = vmatprep.mubr.bf16.mxu0 0
    %167 = vmatmul.mubr.bf16.gmra.mrb[0].mxu0 %v69
    %v168 = vpop.f32.mrb[0].mxu0
    %v169 = vadd.f32 0.0, %v168
    %v170 = vpop.f32.mrb[0].mxu0
    %v171 = vpop.f32.mrb[0].mxu0
    %v172 = vpop.f32.mrb[0].mxu0
    %173 = vdwg.mxu0
    %v174 = vpack.c.bf16 %v169, %v169
    %v175 = vld [vmem:[%s2] sm:$0x1]
    %v176 = vpack.c.bf16 %v175, %v175
    %v178 = vpack.i.b16 %v176, %v176
    %v180 = vlaneseq
    %v181 = vshrl.u32 %v180, 7
    %v182 = vsub.s32 0, %v181
    %v183 = vrot.slane %v178, %v182
    %v184 = vadd.bf16 %v174, %v183
    %v185 = vmax.bf16 %v184, 0
    %v186 = vld [vmem:[#allocation5] sm:$0xf]
    %v187 = vld [vmem:[#allocation5 + $0x4] sm:$0xf]
    %v188 = vld [vmem:[#allocation5 + $0x8] sm:$0xf]
    %v189 = vld [vmem:[#allocation5 + $0xc] sm:$0xf]
    %v190 = vld [vmem:[#allocation5 + $0x10] sm:$0xf]
    %v191 = vld [vmem:[#allocation5 + $0x14] sm:$0xf]
    %v192 = vld [vmem:[#allocation5 + $0x18] sm:$0xf]
    %v193 = vld [vmem:[#allocation5 + $0x1c] sm:$0xf]
    %v194 = vld [vmem:[#allocation5 + $0x20] sm:$0xf]
    %v195 = vld [vmem:[#allocation5 + $0x24] sm:$0xf]
    %v196 = vld [vmem:[#allocation5 + $0x28] sm:$0xf]
    %v197 = vld [vmem:[#allocation5 + $0x2c] sm:$0xf]
    %v198 = vld [vmem:[#allocation5 + $0x30] sm:$0xf]
    %v199 = vld [vmem:[#allocation5 + $0x34] sm:$0xf]
    %v200 = vld [vmem:[#allocation5 + $0x38] sm:$0xf]
    %v201 = vld [vmem:[#allocation5 + $0x3c] sm:$0xf]
    %v218 = vunpack.c.l.b16 %v186
    %v219 = vunpack.c.l.b16 %v187
    %v220 = vunpack.c.l.b16 %v188
    %v221 = vunpack.c.l.b16 %v189
    %v222 = vunpack.c.l.b16 %v190
    %v223 = vunpack.c.l.b16 %v191
    %v224 = vunpack.c.l.b16 %v192
    %v225 = vunpack.c.l.b16 %v193
    %v226 = vunpack.c.l.b16 %v194
    %v227 = vunpack.c.l.b16 %v195
    %v228 = vunpack.c.l.b16 %v196
    %v229 = vunpack.c.l.b16 %v197
    %v230 = vunpack.c.l.b16 %v198
    %v231 = vunpack.c.l.b16 %v199
    %v232 = vunpack.c.l.b16 %v200
    %v233 = vunpack.c.l.b16 %v201
    %v234 = vpack.c.b16 %v219, %v218
    %v235 = vpack.c.b16 %v221, %v220
    %v236 = vpack.c.b16 %v223, %v222
    %v237 = vpack.c.b16 %v225, %v224
    %v238 = vpack.c.b16 %v227, %v226
    %v239 = vpack.c.b16 %v229, %v228
    %v240 = vpack.c.b16 %v231, %v230
    %v241 = vpack.c.b16 %v233, %v232
    %250 = vmatprep.subr.bf16.mxu0 0
    %251 = vmatpush1.bf16.msra.mxu0 %v234
    %252 = vmatprep.subr.bf16.mxu0 0
    %253 = vmatpush1.bf16.msra.mxu0 %v235
    %254 = vmatprep.subr.bf16.mxu0 0
    %255 = vmatpush1.bf16.msra.mxu0 %v236
    %256 = vmatprep.subr.bf16.mxu0 0
    %257 = vmatpush1.bf16.msra.mxu0 %v237
    %258 = vmatprep.subr.bf16.mxu0 0
    %259 = vmatpush1.bf16.msra.mxu0 %v238
    %260 = vmatprep.subr.bf16.mxu0 0
    %261 = vmatpush1.bf16.msra.mxu0 %v239
    %262 = vmatprep.subr.bf16.mxu0 0
    %263 = vmatpush1.bf16.msra.mxu0 %v240
    %264 = vmatprep.subr.bf16.mxu0 0
    %265 = vmatpush1.bf16.msra.mxu0 %v241
    %266 = vmatprep.subr.bf16.mxu0 0
    %267 = vmatpush1.bf16.msra.mxu0 0
    %268 = vmatprep.subr.bf16.mxu0 0
    %269 = vmatpush1.bf16.msra.mxu0 0
    %270 = vmatprep.subr.bf16.mxu0 0
    %271 = vmatpush1.bf16.msra.mxu0 0
    %272 = vmatprep.subr.bf16.mxu0 0
    %273 = vmatpush1.bf16.msra.mxu0 0
    %274 = vmatprep.subr.bf16.mxu0 0
    %275 = vmatpush1.bf16.msra.mxu0 0
    %276 = vmatprep.subr.bf16.mxu0 0
    %277 = vmatpush1.bf16.msra.mxu0 0
    %278 = vmatprep.subr.bf16.mxu0 0
    %279 = vmatpush1.bf16.msra.mxu0 0
    %280 = vmatprep.subr.bf16.mxu0 0
    %281 = vmatpush1.bf16.msra.mxu0 0
    %282 = vmatprep.mubr.bf16.mxu0 0
    %283 = vmatmul.mubr.bf16.gmra.mrb[0].mxu0 %v185
    %v284 = vpop.f32.mrb[0].mxu0
    %v285 = vadd.f32 0.0, %v284
    %v286 = vpop.f32.mrb[0].mxu0
    %v287 = vpop.f32.mrb[0].mxu0
    %v288 = vpop.f32.mrb[0].mxu0
    %289 = vdwg.mxu0
    %v290 = vpack.c.bf16 %v285, %v285
    %v291 = vld [vmem:[%s4] sm:$0x1]
    %v292 = vpack.c.bf16 %v291, %v291
    %v294 = vpack.i.b16 %v292, %v292
    %v296 = vlaneseq
    %v297 = vshrl.u32 %v296, 7
    %v298 = vsub.s32 0, %v297
    %v299 = vrot.slane %v294, %v298
    %v300 = vadd.bf16 %v290, %v299
    %v301 = vmax.bf16 %v300, 0
    %v302 = vld [vmem:[#allocation7] sm:$0xf]
    %v303 = vld [vmem:[#allocation7 + $0x4] sm:$0xf]
    %v304 = vld [vmem:[#allocation7 + $0x8] sm:$0xf]
    %v305 = vld [vmem:[#allocation7 + $0xc] sm:$0xf]
    %v306 = vld [vmem:[#allocation7 + $0x10] sm:$0xf]
    %v307 = vld [vmem:[#allocation7 + $0x14] sm:$0xf]
    %v308 = vld [vmem:[#allocation7 + $0x18] sm:$0xf]
    %v309 = vld [vmem:[#allocation7 + $0x1c] sm:$0xf]
    %v310 = vld [vmem:[#allocation7 + $0x20] sm:$0xf]
    %v311 = vld [vmem:[#allocation7 + $0x24] sm:$0xf]
    %v312 = vld [vmem:[#allocation7 + $0x28] sm:$0xf]
    %v313 = vld [vmem:[#allocation7 + $0x2c] sm:$0xf]
    %v314 = vld [vmem:[#allocation7 + $0x30] sm:$0xf]
    %v315 = vld [vmem:[#allocation7 + $0x34] sm:$0xf]
    %v316 = vld [vmem:[#allocation7 + $0x38] sm:$0xf]
    %v317 = vld [vmem:[#allocation7 + $0x3c] sm:$0xf]
    %v318 = vld [vmem:[%s6] sm:$0x1]
    %v320 = vlaneseq
    %v321 = vshrl.u32 %v320, 7
    %v322 = vsub.s32 0, %v321
    %v323 = vrot.slane %v318, %v322
    %v341 = vunpack.c.l.b16 %v302
    %v342 = vunpack.c.l.b16 %v303
    %v343 = vunpack.c.l.b16 %v304
    %v344 = vunpack.c.l.b16 %v305
    %v345 = vunpack.c.l.b16 %v306
    %v346 = vunpack.c.l.b16 %v307
    %v347 = vunpack.c.l.b16 %v308
    %v348 = vunpack.c.l.b16 %v309
    %v349 = vunpack.c.l.b16 %v310
    %v350 = vunpack.c.l.b16 %v311
    %v351 = vunpack.c.l.b16 %v312
    %v352 = vunpack.c.l.b16 %v313
    %v353 = vunpack.c.l.b16 %v314
    %v354 = vunpack.c.l.b16 %v315
    %v355 = vunpack.c.l.b16 %v316
    %v356 = vunpack.c.l.b16 %v317
    %v357 = vpack.c.b16 %v342, %v341
    %v358 = vpack.c.b16 %v344, %v343
    %v359 = vpack.c.b16 %v346, %v345
    %v360 = vpack.c.b16 %v348, %v347
    %v361 = vpack.c.b16 %v350, %v349
    %v362 = vpack.c.b16 %v352, %v351
    %v363 = vpack.c.b16 %v354, %v353
    %v364 = vpack.c.b16 %v356, %v355
    %373 = vmatprep.subr.bf16.mxu0 0
    %374 = vmatpush1.bf16.msra.mxu0 %v357
    %375 = vmatprep.subr.bf16.mxu0 0
    %376 = vmatpush1.bf16.msra.mxu0 %v358
    %377 = vmatprep.subr.bf16.mxu0 0
    %378 = vmatpush1.bf16.msra.mxu0 %v359
    %379 = vmatprep.subr.bf16.mxu0 0
    %380 = vmatpush1.bf16.msra.mxu0 %v360
    %381 = vmatprep.subr.bf16.mxu0 0
    %382 = vmatpush1.bf16.msra.mxu0 %v361
    %383 = vmatprep.subr.bf16.mxu0 0
    %384 = vmatpush1.bf16.msra.mxu0 %v362
    %385 = vmatprep.subr.bf16.mxu0 0
    %386 = vmatpush1.bf16.msra.mxu0 %v363
    %387 = vmatprep.subr.bf16.mxu0 0
    %388 = vmatpush1.bf16.msra.mxu0 %v364
    %389 = vmatprep.subr.bf16.mxu0 0
    %390 = vmatpush1.bf16.msra.mxu0 0
    %391 = vmatprep.subr.bf16.mxu0 0
    %392 = vmatpush1.bf16.msra.mxu0 0
    %393 = vmatprep.subr.bf16.mxu0 0
    %394 = vmatpush1.bf16.msra.mxu0 0
    %395 = vmatprep.subr.bf16.mxu0 0
    %396 = vmatpush1.bf16.msra.mxu0 0
    %397 = vmatprep.subr.bf16.mxu0 0
    %398 = vmatpush1.bf16.msra.mxu0 0
    %399 = vmatprep.subr.bf16.mxu0 0
    %400 = vmatpush1.bf16.msra.mxu0 0
    %401 = vmatprep.subr.bf16.mxu0 0
    %402 = vmatpush1.bf16.msra.mxu0 0
    %403 = vmatprep.subr.bf16.mxu0 0
    %404 = vmatpush1.bf16.msra.mxu0 0
    %405 = vmatprep.mubr.bf16.mxu0 0
    %406 = vmatmul.mubr.bf16.gmra.mrb[0].mxu0 %v301
    %v407 = vpop.f32.mrb[0].mxu0
    %v408 = vadd.f32 %v323, %v407
    %v409 = vpop.f32.mrb[0].mxu0
    %v410 = vpop.f32.mrb[0].mxu0
    %v411 = vpop.f32.mrb[0].mxu0
    %412 = vdwg.mxu0
    %413 = vst [vmem:[#allocation8] sm:$0xff] %v408
    // Predicated region
    $region42: #{mlp_forward.1} parent=1 // pred_check
      _
    $region43: #{mlp_forward.1} parent=1 // pred_check_branch
      %415 = sbr.rel (0) target = $region45
    $region44: #{mlp_forward.1} parent=1 // pred_region
      %s417 = ssub.s32 128, 128
      %418 = vsyncadd [#allocation4], %s417
      %s420 = sshll.u32 [#allocation8], 4
      %s421 = int_to_ptr.vmem [resolvable:$true] %s420
      %423 = dma.vmem_to_hbm [thread:$0]  %s421, 128, %s7, [#allocation4]
    $region45: #{mlp_forward.1} parent=1 // pred_fallthru
      _
    // Predicated region
    $region46: #{mlp_forward.1} parent=1 // pred_check
      _
    $region47: #{mlp_forward.1} parent=1 // pred_check_branch
      %425 = sbr.rel (0) target = $region49
    $region48: #{mlp_forward.1} parent=1 // pred_region
      %426 = dma.done [#allocation4], 128
    $region49: #{mlp_forward.1} parent=1 // pred_fallthru
      _
    %427 = vsyncpa [#allocation3], 1
    %428 = vsyncpa [#allocation6], 1
    %429 = vsyncpa [#allocation4], 1

</llo_original>
